<compile_context>
chip_gen: v7x
topology: tpu7x:2x2x1
jax: 0.10.0
libtpu: 0.0.40
codegen_flags: <defaults>
</compile_context>

<pallas_src>
import functools

import jax
import jax.numpy as jnp
from jax.experimental import pallas as pl
from jax.experimental.pallas import tpu as pltpu

LANE = 128
TR_MAX = 1024  # rows of 128 lanes per reduction tile (512 KiB f32)


def _weighted_loss_kernel(w_ref, x_ref, y_ref, out_ref, acc_ref, *,
                          metric, n_rows, needs_mask):
    i = pl.program_id(0)          # slice index
    k = pl.program_id(1)          # reduction-tile index
    nk = pl.num_programs(1)

    # Reset the vector accumulator at the start of each slice's reduction.
    @pl.when(k == 0)
    def _():
        acc_ref[...] = jnp.zeros_like(acc_ref)

    x = x_ref[0].astype(jnp.float32)   # (TR, LANE)
    y = y_ref[0].astype(jnp.float32)
    d = x - y
    if metric == "l2":
        per_elem = d * d
    else:  # 'l1'
        per_elem = jnp.abs(d)

    tr = per_elem.shape[0]
    if needs_mask:
        # Zero out rows past the end of this slice (out-of-bounds tile data).
        row_ids = jax.lax.broadcasted_iota(jnp.int32, per_elem.shape, 0)
        valid = (k * tr + row_ids) < n_rows
        per_elem = jnp.where(valid, per_elem, 0.0)

    if tr % 8 == 0:
        # VALU-only fold of the TR rows down to the (8, LANE) accumulator.
        acc_ref[...] += per_elem.reshape(tr // 8, 8, LANE).sum(axis=0)
    else:
        # Small slice (tr == R < 8-multiple): single sublane reduce per step.
        acc_ref[0:1, :] += jnp.sum(per_elem, axis=0, keepdims=True)

    # Emit the weighted partial tile once per slice; the tiny cross-lane sum
    # over the (N, 8, 128) output happens in JAX after the call.
    @pl.when(k == nk - 1)
    def _():
        out_ref[0] = w_ref[i] * acc_ref[...]


def weighted_loss(x, y, weights, metric="l2"):
    """x, y: [N, ...] stacks of slices; weights: [N]. Returns scalar f32."""
    assert metric in ("l1", "l2")
    n = x.shape[0]
    assert y.shape == x.shape
    assert weights.shape == (n,)

    n_elem = 1
    for s in x.shape[1:]:
        n_elem *= s

    # Fold the 'mean' normalization into the (tiny) weights vector.
    w_scaled = weights.astype(jnp.float32) * (1.0 / n_elem)

    xf = x.reshape(n, n_elem)
    yf = y.reshape(n, n_elem)
    pad = (-n_elem) % LANE
    if pad:
        # Only needed when n_elem isn't lane-aligned; padded zeros contribute 0.
        xf = jnp.pad(xf, ((0, 0), (0, pad)))
        yf = jnp.pad(yf, ((0, 0), (0, pad)))
    r = (n_elem + pad) // LANE
    xr = xf.reshape(n, r, LANE)
    yr = yf.reshape(n, r, LANE)

    tr = min(TR_MAX, r)                # tile rows; == r (full dim) if small
    kt = pl.cdiv(r, tr)                # reduction-axis grid extent
    needs_mask = (r % tr) != 0         # last reduction tile is partial

    kernel = functools.partial(
        _weighted_loss_kernel,
        metric=metric,
        n_rows=r,
        needs_mask=needs_mask,
    )

    out = pl.pallas_call(
        kernel,
        out_shape=jax.ShapeDtypeStruct((n, 8, LANE), jnp.float32),
        grid=(n, kt),
        in_specs=[
            # weights: whole vector resident in SMEM (scalar reads by index)
            pl.BlockSpec(memory_space=pltpu.MemorySpace.SMEM),
            # one (1, TR, 128) tile of x / y per grid step
            pl.BlockSpec((1, tr, LANE), lambda i, k: (i, k, 0)),
            pl.BlockSpec((1, tr, LANE), lambda i, k: (i, k, 0)),
        ],
        # per-slice weighted partial tile (lane-dense), resident across k
        out_specs=pl.BlockSpec((1, 8, LANE), lambda i, k: (i, 0, 0)),
        scratch_shapes=[pltpu.VMEM((8, LANE), jnp.float32)],
        compiler_params=pltpu.CompilerParams(
            dimension_semantics=("parallel", "arbitrary"),
        ),
    )(w_scaled, xr, yr)

    return jnp.sum(out)


if __name__ == "__main__":
    key = jax.random.PRNGKey(0)
    k1, k2, k3, k4 = jax.random.split(key, 4)

    # Case 1: N = 3 weighted slices, each shaped like a small NCHW feature map.
    N = 3
    shape = (N, 2, 4, 16, 16)  # zip over leading dim <=> list of 3 tensors
    x = jax.random.normal(k1, shape, dtype=jnp.float32)
    y = jax.random.normal(k2, shape, dtype=jnp.float32)
    weights = jnp.array([0.5, 1.0, 2.0], dtype=jnp.float32)

    out_l2 = jax.block_until_ready(weighted_loss(x, y, weights, metric="l2"))
    out_l1 = jax.block_until_ready(weighted_loss(x, y, weights, metric="l1"))

    ref_l2 = jnp.sum(weights * jnp.mean((x - y) ** 2, axis=(1, 2, 3, 4)))
    ref_l1 = jnp.sum(weights * jnp.mean(jnp.abs(x - y), axis=(1, 2, 3, 4)))
    assert jnp.allclose(out_l2, ref_l2, rtol=1e-4, atol=1e-5)
    assert jnp.allclose(out_l1, ref_l1, rtol=1e-4, atol=1e-5)

    # Case 2: slices large enough that the reduction axis is tiled (kt > 1)
    # and the final partial tile exercises the in-kernel mask.
    N2 = 2
    shape2 = (N2, 1025, 128)
    x2 = jax.random.normal(k3, shape2, dtype=jnp.float32)
    y2 = jax.random.normal(k4, shape2, dtype=jnp.float32)
    w2 = jnp.array([1.5, 0.25], dtype=jnp.float32)
    out2 = jax.block_until_ready(weighted_loss(x2, y2, w2, metric="l2"))
    ref2 = jnp.sum(w2 * jnp.mean((x2 - y2) ** 2, axis=(1, 2)))
    assert jnp.allclose(out2, ref2, rtol=1e-4, atol=1e-5)

    print("KERNEL_OK")
</pallas_src>

<mosaic_0001>
module attributes {stable_mosaic.version = 11 : i64} {
  func.func @_weighted_loss_kernel(%arg0: i32, %arg1: i32, %arg2: memref<3xf32, #tpu.memory_space<smem>>, %arg3: memref<1x16x128xf32, #tpu.memory_space<vmem>>, %arg4: memref<1x16x128xf32, #tpu.memory_space<vmem>>, %arg5: memref<1x8x128xf32, #tpu.memory_space<vmem>>, %arg6: memref<8x128xf32, #tpu.memory_space<vmem>>) attributes {dimension_semantics = [#tpu.dimension_semantics<parallel>, #tpu.dimension_semantics<arbitrary>], iteration_bounds = array<i64: 3, 1>, scalar_prefetch = 0 : i64, scratch_operands = 1 : i64, tpu.core_type = #tpu.core_type<tc>, window_params = [{transform_indices = @transform_0, window_bounds = array<i64: 3>}, {transform_indices = @transform_1, window_bounds = array<i64: 1, 16, 128>}, {transform_indices = @transform_2, window_bounds = array<i64: 1, 16, 128>}, {transform_indices = @transform_3, window_bounds = array<i64: 1, 8, 128>}]} {
    %c0_i32 = arith.constant 0 : i32
    %0 = arith.cmpi eq, %arg1, %c0_i32 : i32
    %1 = arith.extui %0 : i1 to i32
    %c0_i32_0 = arith.constant 0 : i32
    %2 = arith.cmpi ne, %1, %c0_i32_0 : i32
    scf.if %2 {
      %cst_12 = arith.constant 0.000000e+00 : f32
      %17 = vector.broadcast %cst_12 : f32 to vector<8x128xf32>
      %c0_13 = arith.constant 0 : index
      %c0_14 = arith.constant 0 : index
      %18 = vector.load %arg6[%c0_13, %c0_14] : memref<8x128xf32, #tpu.memory_space<vmem>>, vector<8x128xf32>
      tpu.vector_store %arg6[%c0_13, %c0_14], %17 {strides = array<i32>} : memref<8x128xf32, #tpu.memory_space<vmem>>, vector<8x128xf32>,
    } else {
    }
    %c0 = arith.constant 0 : index
    %c0_1 = arith.constant 0 : index
    %c0_2 = arith.constant 0 : index
    %3 = vector.load %arg3[%c0, %c0_1, %c0_2] : memref<1x16x128xf32, #tpu.memory_space<vmem>>, vector<1x16x128xf32>
    %4 = vector.shape_cast %3 : vector<1x16x128xf32> to vector<16x128xf32>
    %c0_3 = arith.constant 0 : index
    %c0_4 = arith.constant 0 : index
    %c0_5 = arith.constant 0 : index
    %5 = vector.load %arg4[%c0_3, %c0_4, %c0_5] : memref<1x16x128xf32, #tpu.memory_space<vmem>>, vector<1x16x128xf32>
    %6 = vector.shape_cast %5 : vector<1x16x128xf32> to vector<16x128xf32>
    %7 = arith.subf %4, %6 : vector<16x128xf32>
    %8 = arith.mulf %7, %7 : vector<16x128xf32>
    %c0_6 = arith.constant 0 : index
    %c0_7 = arith.constant 0 : index
    %9 = vector.load %arg6[%c0_6, %c0_7] : memref<8x128xf32, #tpu.memory_space<vmem>>, vector<8x128xf32>
    %10 = vector.shape_cast %8 : vector<16x128xf32> to vector<2x8x128xf32>
    %cst = arith.constant dense<0.000000e+00> : vector<8x128xf32>
    %11 = vector.multi_reduction <add>, %10, %cst [0] : vector<2x8x128xf32> to vector<8x128xf32>
    %12 = arith.addf %9, %11 : vector<8x128xf32>
    %c0_8 = arith.constant 0 : index
    %c0_9 = arith.constant 0 : index
    %13 = vector.load %arg6[%c0_8, %c0_9] : memref<8x128xf32, #tpu.memory_space<vmem>>, vector<8x128xf32>
    tpu.vector_store %arg6[%c0_8, %c0_9], %12 {strides = array<i32>} : memref<8x128xf32, #tpu.memory_space<vmem>>, vector<8x128xf32>,
    %c0_i32_10 = arith.constant 0 : i32
    %14 = arith.cmpi eq, %arg1, %c0_i32_10 : i32
    %15 = arith.extui %14 : i1 to i32
    %c0_i32_11 = arith.constant 0 : i32
    %16 = arith.cmpi ne, %15, %c0_i32_11 : i32
    scf.if %16 {
      %17 = arith.index_cast %arg0 : i32 to index
      %18 = memref.load %arg2[%17] : memref<3xf32, #tpu.memory_space<smem>>
      %c0_12 = arith.constant 0 : index
      %c0_13 = arith.constant 0 : index
      %19 = vector.load %arg6[%c0_12, %c0_13] : memref<8x128xf32, #tpu.memory_space<vmem>>, vector<8x128xf32>
      %20 = vector.broadcast %18 : f32 to vector<8x128xf32>
      %21 = arith.mulf %20, %19 : vector<8x128xf32>
      %c0_14 = arith.constant 0 : index
      %c0_15 = arith.constant 0 : index
      %c0_16 = arith.constant 0 : index
      %22 = vector.load %arg5[%c0_14, %c0_15, %c0_16] : memref<1x8x128xf32, #tpu.memory_space<vmem>>, vector<1x8x128xf32>
      %23 = vector.shape_cast %22 : vector<1x8x128xf32> to vector<8x128xf32>
      %24 = vector.shape_cast %21 : vector<8x128xf32> to vector<1x8x128xf32>
      tpu.vector_store %arg5[%c0_14, %c0_15, %c0_16], %24 {strides = array<i32>} : memref<1x8x128xf32, #tpu.memory_space<vmem>>, vector<1x8x128xf32>,
    } else {
    }
    return
  }
  func.func @transform_0(%arg0: i32, %arg1: i32) -> i32 {
    %c0_i32 = arith.constant 0 : i32
    %c0_i32_0 = arith.constant 0 : i32
    return %c0_i32 : i32
  }
  func.func @transform_1(%arg0: i32, %arg1: i32) -> (i32, i32, i32) {
    %c0_i32 = arith.constant 0 : i32
    %c0_i32_0 = arith.constant 0 : i32
    return %arg0, %arg1, %c0_i32 : i32, i32, i32
  }
  func.func @transform_2(%arg0: i32, %arg1: i32) -> (i32, i32, i32) {
    %c0_i32 = arith.constant 0 : i32
    %c0_i32_0 = arith.constant 0 : i32
    return %arg0, %arg1, %c0_i32 : i32, i32, i32
  }
  func.func @transform_3(%arg0: i32, %arg1: i32) -> (i32, i32, i32) {
    %c0_i32 = arith.constant 0 : i32
    %c0_i32_0 = arith.constant 0 : i32
    %c0_i32_1 = arith.constant 0 : i32
    return %arg0, %c0_i32, %c0_i32_0 : i32, i32, i32
  }
}

</mosaic_0001>

<llo_original>
// kernel: tpu_custom_call.1
$region0: #{tpu_custom_call.1}
  #allocation0 [shape = 'u32[]', space=smem, size = 0x4, offset = 0x4, fixed_abs, tag = 'smem constant byte address 0x4 - core index']
  #allocation1 [shape = 'u32[144,128]{1,0:T(1,128)}', space=vmem, size = 0x12000, scoped, tag = 'internal scratch']
  #allocation2 [shape = 'f32[8,128]{1,0:T(8,128)}', space=vmem, size = 0x1000, scoped, tag = 'scratch operand']
  %s0 = inlined_call_operand.hbm [shape: f32[3], index: 0, kind: input, shape index: {}]
  %s1 = inlined_call_operand.hbm [shape: f32[3,16,128], index: 1, kind: input, shape index: {}]
  %s2 = inlined_call_operand.hbm [shape: f32[3,16,128], index: 2, kind: input, shape index: {}]
  %s3 = inlined_call_operand.hbm [shape: f32[3,8,128], index: 3, kind: output, shape index: {}]
  %s4 = sld [smem:[#allocation0]]
  $region65: #{tpu_custom_call.1} parent=0
    _
  %s6 = ssub.s32 1, %s4
  %s7 = scalar_select 0, %s6, %s4
  $region1: #{tpu_custom_call.1} parent=0
    #allocation3 [shape = 'u8[512]{0}', space=smem, size = 0x200, scoped, tag = 'input window, operand 0, single buffered']
    #allocation4 [shape = 's32[2]{0}', space=sflag, size = 0x8, scoped, tag = 'scoped memory for tpu_custom_call.1']
    #allocation5 [shape = 's32[2]{0}', space=sflag, size = 0x8, scoped, tag = 'scoped memory for tpu_custom_call.1']
    #allocation6 [shape = 's32[2]{0}', space=sflag, size = 0x8, scoped, tag = 'scoped memory for tpu_custom_call.1']
    #allocation7 [shape = 'u8[16384]{0}', space=vmem, size = 0x4000, scoped, tag = 'input window, operand 1']
    #allocation8 [shape = 'u8[16384]{0}', space=vmem, size = 0x4000, scoped, tag = 'input window, operand 2']
    #allocation9 [shape = 's32[2]{0}', space=sflag, size = 0x8, scoped, tag = 'scoped memory for tpu_custom_call.1']
    #allocation10 [shape = 'u8[8192]{0}', space=vmem, size = 0x2000, scoped, tag = 'output window, operand 0']
    %8 = vsyncpa [#allocation6], 0
    %9 = vsyncpa [#allocation4], 0
    %s10 = scalar_lea.sflag [#allocation4], 1
    %11 = vsyncpa %s10, 0
    %12 = vsyncpa [#allocation9], 0
    %s13 = scalar_lea.sflag [#allocation9], 1
    %14 = vsyncpa %s13, 0
    %15 = vsyncpa [#allocation5], 0
    %s16 = scalar_lea.sflag [#allocation5], 1
    %17 = vsyncpa %s16, 0
    loop: start=0, step=1, limit=5
    $region2: #{tpu_custom_call.1} parent=1 // loop_pre_header
      _
    $region3: #{tpu_custom_call.1} parent=1 // loop_header
      %s19 = sphi 0, %s23
      %p20 = scmp.ge.s32.totalorder %s19, 5
      %s26 = sphi 0, %s38
      %s27 = sphi 0, %s34
      %s28 = sphi 0, %s26
      %s29 = sphi 0, %s27
      %s30 = sphi 0, %s28
      %s31 = sphi 0, %s29
      %s39 = sphi 0, %s39
      %s41 = sphi 0, %s39
      %s42 = sphi 0, %s41
      %s56 = sphi 0, %s42
      %s64 = sphi 0, %s66
      %s67 = sphi 0, %s64
      %s68 = sphi 0, %s67
      %s84 = sphi 0, %s68
      %s92 = sphi 0, %s94
      %s95 = sphi 0, %s92
      %s96 = sphi 0, %s95
      %s112 = sphi 0, %s96
      %s118 = sphi 0, %s120
      %s121 = sphi 0, %s118
      %s122 = sphi 0, %s121
      %s138 = sphi 0, %s122
    $region4: #{tpu_custom_call.1} parent=1 // loop_header_branch
      %22 = sbr.rel (%p20) target = $region8
    $region5: #{tpu_custom_call.1} parent=1 // loop_body
      %s24 = ssub.s32 %s19, 1
      %s25 = ssub.s32 %s19, 2
      %s32 = sadd.s32 1, %s27
      %p33 = scmp.ge.s32.totalorder %s32, 1
      %s34 = scalar_select %p33, 0, %s32
      %s35 = sadd.s32 1, %s26
      %s36 = scalar_select %p33, %s35, %s26
      %p37 = scmp.ge.s32.totalorder %s36, 3
      %s38 = scalar_select %p37, 0, %s36
      %s40 = sadd.s32 %s39, 1
      %p43 = scmp.eq.s32.totalorder %s19, 2
      %p44 = scmp.ne.s32.totalorder %s39, %s41
      %p45 = scmp.eq.s32.totalorder %s19, 0
      %p46 = por %p44, %p45
      %p47 = scmp.ne.s32.totalorder %s39, %s41
      %p48 = scmp.eq.s32.totalorder %s24, 2
      %p49 = por %p47, %p48
      %p50 = scmp.ne.s32.totalorder %s41, %s42
      %p51 = scmp.eq.s32.totalorder %s24, 0
      %p52 = por %p50, %p51
      %p53 = scmp.ne.s32.totalorder %s41, %s42
      %p54 = scmp.eq.s32.totalorder %s25, 2
      %p55 = por %p53, %p54
      %p57 = scmp.ne.s32.totalorder %s42, %s56
      %p58 = scmp.eq.s32.totalorder %s25, 0
      %p59 = por %p57, %p58
      %s60 = ssub.s32 %s26, %s38
      %s61 = ssub.s32 %s27, %s34
      %s62 = sor.u32 %s60, %s61
      %p63 = scmp.eq.s32.totalorder %s62, 0
      %s65 = sadd.s32 %s64, 1
      %s66 = scalar_select %p63, %s64, %s65
      %p69 = pneg %p63
      %p70 = scmp.eq.s32.totalorder %s19, 2
      %p71 = por %p69, %p70
      %p72 = scmp.ne.s32.totalorder %s64, %s67
      %p73 = scmp.eq.s32.totalorder %s19, 0
      %p74 = por %p72, %p73
      %p75 = scmp.ne.s32.totalorder %s64, %s67
      %p76 = scmp.eq.s32.totalorder %s24, 2
      %p77 = por %p75, %p76
      %p78 = scmp.ne.s32.totalorder %s67, %s68
      %p79 = scmp.eq.s32.totalorder %s24, 0
      %p80 = por %p78, %p79
      %p81 = scmp.ne.s32.totalorder %s67, %s68
      %p82 = scmp.eq.s32.totalorder %s25, 2
      %p83 = por %p81, %p82
      %p85 = scmp.ne.s32.totalorder %s68, %s84
      %p86 = scmp.eq.s32.totalorder %s25, 0
      %p87 = por %p85, %p86
      %s88 = ssub.s32 %s26, %s38
      %s89 = ssub.s32 %s27, %s34
      %s90 = sor.u32 %s88, %s89
      %p91 = scmp.eq.s32.totalorder %s90, 0
      %s93 = sadd.s32 %s92, 1
      %s94 = scalar_select %p91, %s92, %s93
      %p97 = pneg %p91
      %p98 = scmp.eq.s32.totalorder %s19, 2
      %p99 = por %p97, %p98
      %p100 = scmp.ne.s32.totalorder %s92, %s95
      %p101 = scmp.eq.s32.totalorder %s19, 0
      %p102 = por %p100, %p101
      %p103 = scmp.ne.s32.totalorder %s92, %s95
      %p104 = scmp.eq.s32.totalorder %s24, 2
      %p105 = por %p103, %p104
      %p106 = scmp.ne.s32.totalorder %s95, %s96
      %p107 = scmp.eq.s32.totalorder %s24, 0
      %p108 = por %p106, %p107
      %p109 = scmp.ne.s32.totalorder %s95, %s96
      %p110 = scmp.eq.s32.totalorder %s25, 2
      %p111 = por %p109, %p110
      %p113 = scmp.ne.s32.totalorder %s96, %s112
      %p114 = scmp.eq.s32.totalorder %s25, 0
      %p115 = por %p113, %p114
      %s116 = ssub.s32 %s26, %s38
      %p117 = scmp.eq.s32.totalorder %s116, 0
      %s119 = sadd.s32 %s118, 1
      %s120 = scalar_select %p117, %s118, %s119
      %p123 = pneg %p117
      %p124 = scmp.eq.s32.totalorder %s19, 2
      %p125 = por %p123, %p124
      %p126 = scmp.ne.s32.totalorder %s118, %s121
      %p127 = scmp.eq.s32.totalorder %s19, 0
      %p128 = por %p126, %p127
      %p129 = scmp.ne.s32.totalorder %s118, %s121
      %p130 = scmp.eq.s32.totalorder %s24, 2
      %p131 = por %p129, %p130
      %p132 = scmp.ne.s32.totalorder %s121, %s122
      %p133 = scmp.eq.s32.totalorder %s24, 0
      %p134 = por %p132, %p133
      %p135 = scmp.ne.s32.totalorder %s121, %s122
      %p136 = scmp.eq.s32.totalorder %s25, 2
      %p137 = por %p135, %p136
      %p139 = scmp.ne.s32.totalorder %s122, %s138
      %p140 = scmp.eq.s32.totalorder %s25, 0
      %p141 = por %p139, %p140
      %p142 = scmp.le.s32.totalorder 1, %s19
      %p143 = scmp.lt.s32.totalorder %s19, 4
      %p144 = pnand %p142, %p143
      %p145 = pneg %p144
      // Predicated region
      $region9: #{tpu_custom_call.1} parent=5 // pred_check
        _
      $region10: #{tpu_custom_call.1} parent=5 // pred_check_branch
        %147 = sbr.rel (%p144) target = $region12
      $region11: #{tpu_custom_call.1} parent=5 // pred_region
        %s148 = ssub.s32 %s19, 1
        // Predicated region
        $region13: #{tpu_custom_call.1} parent=11 // pred_check
          %p149 = pneg %p52
        $region14: #{tpu_custom_call.1} parent=11 // pred_check_branch
          %151 = sbr.rel (%p149) target = $region16
        $region15: #{tpu_custom_call.1} parent=11 // pred_region
          %s153 = ssub.s32 16, 16
          %154 = vsyncadd [#allocation6], %s153
          %157 = dma.hbm_to_smem %s0, 16, [#allocation3], [#allocation6]
        $region16: #{tpu_custom_call.1} parent=11 // pred_fallthru
          _
      $region12: #{tpu_custom_call.1} parent=5 // pred_fallthru
        _
      %p158 = scmp.lt.s32.totalorder %s19, 3
      // Predicated region
      $region17: #{tpu_custom_call.1} parent=5 // pred_check
        %p159 = pneg %p158
      $region18: #{tpu_custom_call.1} parent=5 // pred_check_branch
        %161 = sbr.rel (%p159) target = $region20
      $region19: #{tpu_custom_call.1} parent=5 // pred_region
        // Predicated region
        $region21: #{tpu_custom_call.1} parent=19 // pred_check
          %p162 = pneg %p74
        $region22: #{tpu_custom_call.1} parent=19 // pred_check_branch
          %164 = sbr.rel (%p162) target = $region24
        $region23: #{tpu_custom_call.1} parent=19 // pred_region
          %s165 = sand.u32 %s64, 1
          %s166 = scalar_lea.sflag [#allocation4], %s165
          %s167 = sand.u32 %s64, 1
          %s168 = smul.addr %s167, 16
          %s169 = scalar_lea.vmem [#allocation7], %s168
          %s170 = smul.u32 2, %s27
          %s172 = ssub.s32 256, 256
          %173 = vsyncadd %s166, %s172
          %s174 = smul.addr %s26, 2
          %s175 = sadd.s32 %s170, %s174
          %s176 = smul.addr %s175, 128
          %s177 = scalar_lea.hbm %s1, %s176
          %s178 = sshll.u32 %s169, 4
          %s179 = int_to_ptr.vmem [resolvable:$true] %s178
          %184 = dma.hbm_to_vmem [thread:$0]  %s177, 256, %s179, %s166, 128, 128, 8
        $region24: #{tpu_custom_call.1} parent=19 // pred_fallthru
          _
        // Predicated region
        $region25: #{tpu_custom_call.1} parent=19 // pred_check
          %p185 = pneg %p102
        $region26: #{tpu_custom_call.1} parent=19 // pred_check_branch
          %187 = sbr.rel (%p185) target = $region28
        $region27: #{tpu_custom_call.1} parent=19 // pred_region
          %s188 = sand.u32 %s92, 1
          %s189 = scalar_lea.sflag [#allocation9], %s188
          %s190 = sand.u32 %s92, 1
          %s191 = smul.addr %s190, 16
          %s192 = scalar_lea.vmem [#allocation8], %s191
          %s193 = smul.u32 2, %s27
          %s195 = ssub.s32 256, 256
          %196 = vsyncadd %s189, %s195
          %s197 = smul.addr %s26, 2
          %s198 = sadd.s32 %s193, %s197
          %s199 = smul.addr %s198, 128
          %s200 = scalar_lea.hbm %s2, %s199
          %s201 = sshll.u32 %s192, 4
          %s202 = int_to_ptr.vmem [resolvable:$true] %s201
          %207 = dma.hbm_to_vmem [thread:$0]  %s200, 256, %s202, %s189, 128, 128, 8
        $region28: #{tpu_custom_call.1} parent=19 // pred_fallthru
          _
      $region20: #{tpu_custom_call.1} parent=5 // pred_fallthru
        _
      %p208 = scmp.le.s32.totalorder 1, %s19
      %p209 = scmp.lt.s32.totalorder %s19, 4
      %p210 = pnand %p208, %p209
      %p211 = pneg %p210
      // Predicated region
      $region29: #{tpu_custom_call.1} parent=5 // pred_check
        _
      $region30: #{tpu_custom_call.1} parent=5 // pred_check_branch
        %213 = sbr.rel (%p210) target = $region32
      $region31: #{tpu_custom_call.1} parent=5 // pred_region
        %s214 = ssub.s32 %s19, 1
        // Predicated region
        $region33: #{tpu_custom_call.1} parent=31 // pred_check
          %p215 = pneg %p52
        $region34: #{tpu_custom_call.1} parent=31 // pred_check_branch
          %217 = sbr.rel (%p215) target = $region36
        $region35: #{tpu_custom_call.1} parent=31 // pred_region
          %218 = dma.done [#allocation6], 16
        $region36: #{tpu_custom_call.1} parent=31 // pred_fallthru
          _
        %s219 = sand.u32 %s67, 1
        %s220 = scalar_lea.sflag [#allocation4], %s219
        %s221 = sand.u32 %s67, 1
        %s222 = smul.addr %s221, 16
        %s223 = scalar_lea.vmem [#allocation7], %s222
        // Predicated region
        $region37: #{tpu_custom_call.1} parent=31 // pred_check
          %p224 = pneg %p80
        $region38: #{tpu_custom_call.1} parent=31 // pred_check_branch
          %226 = sbr.rel (%p224) target = $region40
        $region39: #{tpu_custom_call.1} parent=31 // pred_region
          %227 = dma.done %s220, 256
        $region40: #{tpu_custom_call.1} parent=31 // pred_fallthru
          _
        %s228 = sand.u32 %s95, 1
        %s229 = scalar_lea.sflag [#allocation9], %s228
        %s230 = sand.u32 %s95, 1
        %s231 = smul.addr %s230, 16
        %s232 = scalar_lea.vmem [#allocation8], %s231
        // Predicated region
        $region41: #{tpu_custom_call.1} parent=31 // pred_check
          %p233 = pneg %p108
        $region42: #{tpu_custom_call.1} parent=31 // pred_check_branch
          %235 = sbr.rel (%p233) target = $region44
        $region43: #{tpu_custom_call.1} parent=31 // pred_region
          %236 = dma.done %s229, 256
        $region44: #{tpu_custom_call.1} parent=31 // pred_fallthru
          _
        %237 = sfence
        %p238 = pneg %p52
        %p239 = pneg %p49
        %s240 = sand.u32 %s67, 1
        %s241 = scalar_lea.sflag [#allocation4], %s240
        %s242 = sand.u32 %s67, 1
        %s243 = smul.addr %s242, 16
        %s244 = scalar_lea.vmem [#allocation7], %s243
        %p245 = pneg %p80
        %p246 = pneg %p77
        %s247 = sand.u32 %s95, 1
        %s248 = scalar_lea.sflag [#allocation9], %s247
        %s249 = sand.u32 %s95, 1
        %s250 = smul.addr %s249, 16
        %s251 = scalar_lea.vmem [#allocation8], %s250
        %p252 = pneg %p108
        %p253 = pneg %p105
        %p254 = pneg %p134
        %p255 = pneg %p131
        %s256 = sand.u32 %s121, 1
        %s257 = scalar_lea.sflag [#allocation5], %s256
        %s258 = sand.u32 %s121, 1
        %s259 = smul.addr %s258, 8
        %s260 = scalar_lea.vmem [#allocation10], %s259
        %s261 = smul.u32 2, %s29
        %s262 = smul.u32 2, %s29
        %p263 = scmp.eq.s32.totalorder %s29, 0
        // Predicated region
        $region45: #{tpu_custom_call.1} parent=31 // pred_check
          %p264 = pneg %p263
        $region46: #{tpu_custom_call.1} parent=31 // pred_check_branch
          %266 = sbr.rel (%p264) target = $region48
        $region47: #{tpu_custom_call.1} parent=31 // pred_region
          %267 = vst [vmem:[#allocation2] sm:$0xff] 0.0
        $region48: #{tpu_custom_call.1} parent=31 // pred_fallthru
          _
        %v268 = vld [vmem:[%s223] sm:$0xff]
        %v269 = vld [vmem:[%s223 + $0x8] sm:$0xff]
        %v270 = vld [vmem:[%s232] sm:$0xff]
        %v271 = vld [vmem:[%s232 + $0x8] sm:$0xff]
        %v272 = vsub.f32 %v268, %v270
        %v273 = vsub.f32 %v269, %v271
        %v274 = vmul.f32 %v272, %v272
        %v275 = vmul.f32 %v273, %v273
        %v276 = vld [vmem:[#allocation2] sm:$0xff]
        %v277 = vadd.f32 %v274, %v275
        %v278 = vadd.f32 %v276, %v277
        %279 = vst [vmem:[#allocation2] sm:$0xff] %v278
        // Predicated region
        $region49: #{tpu_custom_call.1} parent=31 // pred_check
          %p280 = pneg %p263
        $region50: #{tpu_custom_call.1} parent=31 // pred_check_branch
          %282 = sbr.rel (%p280) target = $region52
        $region51: #{tpu_custom_call.1} parent=31 // pred_region
          %s283 = sld [smem:[#allocation3 + %s28]]
          %v284 = vld [vmem:[#allocation2] sm:$0xff]
          %v285 = vstv %s283
          %v286 = vmul.f32 %v285, %v284
          %287 = vst [vmem:[%s260] sm:$0xff] %v286
        $region52: #{tpu_custom_call.1} parent=31 // pred_fallthru
          _
        %s288 = sand.u32 %s121, 1
        %s289 = scalar_lea.sflag [#allocation5], %s288
        %s290 = sand.u32 %s121, 1
        %s291 = smul.addr %s290, 8
        %s292 = scalar_lea.vmem [#allocation10], %s291
        // Predicated region
        $region53: #{tpu_custom_call.1} parent=31 // pred_check
          %p293 = pneg %p131
        $region54: #{tpu_custom_call.1} parent=31 // pred_check_branch
          %295 = sbr.rel (%p293) target = $region56
        $region55: #{tpu_custom_call.1} parent=31 // pred_region
          %s297 = ssub.s32 128, 128
          %298 = vsyncadd %s289, %s297
          %s299 = smul.addr %s28, 128
          %s300 = scalar_lea.hbm %s3, %s299
          %s302 = sshll.u32 %s292, 4
          %s303 = int_to_ptr.vmem [resolvable:$true] %s302
          %305 = dma.vmem_to_hbm [thread:$0]  %s303, 128, %s300, %s289
        $region56: #{tpu_custom_call.1} parent=31 // pred_fallthru
          _
      $region32: #{tpu_custom_call.1} parent=5 // pred_fallthru
        _
      %p306 = scmp.le.s32.totalorder 2, %s19
      // Predicated region
      $region57: #{tpu_custom_call.1} parent=5 // pred_check
        %p307 = pneg %p306
      $region58: #{tpu_custom_call.1} parent=5 // pred_check_branch
        %309 = sbr.rel (%p307) target = $region60
      $region59: #{tpu_custom_call.1} parent=5 // pred_region
        %s310 = ssub.s32 %s19, 2
        // Predicated region
        $region61: #{tpu_custom_call.1} parent=59 // pred_check
          %p311 = pneg %p137
        $region62: #{tpu_custom_call.1} parent=59 // pred_check_branch
          %313 = sbr.rel (%p311) target = $region64
        $region63: #{tpu_custom_call.1} parent=59 // pred_region
          %s314 = sand.u32 %s122, 1
          %s315 = scalar_lea.sflag [#allocation5], %s314
          %s316 = sand.u32 %s122, 1
          %s317 = smul.addr %s316, 8
          %s318 = scalar_lea.vmem [#allocation10], %s317
          %319 = dma.done %s315, 128
        $region64: #{tpu_custom_call.1} parent=59 // pred_fallthru
          _
      $region60: #{tpu_custom_call.1} parent=5 // pred_fallthru
        _
    $region6: #{tpu_custom_call.1} parent=1 // loop_footer
      %s23 = sadd.s32 1, %s19
    $region7: #{tpu_custom_call.1} parent=1 // loop_footer_branch
      %18 = sbr.rel target = $region3
    $region8: #{tpu_custom_call.1} parent=1 // loop_exit
      _
    %320 = vsyncpa [#allocation4], 1
    %s321 = scalar_lea.sflag [#allocation4], 1
    %322 = vsyncpa %s321, 1
    %323 = vsyncpa [#allocation9], 1
    %s324 = scalar_lea.sflag [#allocation9], 1
    %325 = vsyncpa %s324, 1
    %326 = vsyncpa [#allocation5], 1
    %s327 = scalar_lea.sflag [#allocation5], 1
    %328 = vsyncpa %s327, 1
    %329 = vsyncpa [#allocation6], 1
    %s330 = scalar_lea.sflag [#allocation6], 1
    %331 = vsyncpa %s330, 1

</llo_original>
